<compile_context>
chip_gen: v7x
topology: tpu7x:2x2x1
jax: 0.10.0
libtpu: 0.0.40
codegen_flags: <defaults>
</compile_context>

<pallas_src>
import jax
import jax.numpy as jnp
from jax.experimental import pallas as pl
from jax.experimental.pallas import tpu as pltpu


def _round_up(x, m):
    return (x + m - 1) // m * m


# ---------------------------------------------------------------------------
# Fused Pallas kernel: conv1 (im2col matmul) -> running max-pool -> head
# ---------------------------------------------------------------------------

def fused_kernel(cols_ref, convw_ref, headw_ref, headb_ref, out_ref, max_acc):
    # cols_ref : [1, tile_p, 49]  bf16   (edge-padded spatial rows -> no mask)
    # convw_ref: [49, C_pad]      bf16
    # headw_ref: [C_pad, F_pad]   bf16   (BN folded in)
    # headb_ref: [1, F_pad]       f32
    # out_ref  : [1, 1, F_pad]    f32
    # max_acc  : [8, C_pad]       f32    (sublane-wise running max)
    s = pl.program_id(1)

    # Init the running-max accumulator at the first spatial tile of each b.
    @pl.when(s == 0)
    def _():
        max_acc[...] = jnp.full_like(max_acc, -jnp.inf)

    # conv1 as an im2col matmul on the MXU (bf16 inputs, f32 accumulate).
    # K=49 is left unpadded in HBM; Mosaic pads the contraction dim in VMEM.
    conv = jnp.dot(cols_ref[0], convw_ref[...],
                   preferred_element_type=jnp.float32)          # [tile_p, C_pad]

    # Running AdaptiveMaxPool2d(1): VPU-only elementwise vmax into 8 sublanes;
    # the cross-sublane reduce is deferred to the finalize step below.
    part = jnp.max(conv.reshape(-1, 8, conv.shape[-1]), axis=0)  # [8, C_pad]
    max_acc[...] = jnp.maximum(max_acc[...], part)

    # Head (dropout=identity, Linear with BN folded in) on the last tile only.
    @pl.when(s == pl.num_programs(1) - 1)
    def _():
        pooled = jnp.max(max_acc[...], axis=0, keepdims=True)   # [1, C_pad] (one XLU reduce)
        y = jnp.dot(pooled.astype(jnp.bfloat16), headw_ref[...],
                    preferred_element_type=jnp.float32) + headb_ref[...]
        out_ref[0] = y                                           # [1, F_pad] lane-dense store


def arcface_fused_pallas(cols, conv_w, head_w, head_b, *, tile_p):
    # cols:   [B, P_pad, 49]   bf16  (im2col'ed, spatial rows edge-padded)
    # conv_w: [49, C_pad]      bf16
    # head_w: [C_pad, F_pad]   bf16  (BN folded in)
    # head_b: [1, F_pad]       f32
    B, P_pad, K = cols.shape
    C_pad = conv_w.shape[1]
    F_pad = head_w.shape[1]
    n_s = P_pad // tile_p

    out = pl.pallas_call(
        fused_kernel,
        out_shape=jax.ShapeDtypeStruct((B, 1, F_pad), jnp.float32),
        grid=(B, n_s),
        in_specs=[
            pl.BlockSpec((1, tile_p, K), lambda b, s: (b, s, 0)),
            pl.BlockSpec((K, C_pad), lambda b, s: (0, 0)),
            pl.BlockSpec((C_pad, F_pad), lambda b, s: (0, 0)),
            pl.BlockSpec((1, F_pad), lambda b, s: (0, 0)),
        ],
        out_specs=pl.BlockSpec((1, 1, F_pad), lambda b, s: (b, 0, 0)),
        scratch_shapes=[pltpu.VMEM((8, C_pad), jnp.float32)],
        compiler_params=pltpu.CompilerParams(
            dimension_semantics=("parallel", "arbitrary")),
    )(cols, conv_w, head_w, head_b)
    return out[:, 0, :]                                          # [B, F_PAD]


# ---------------------------------------------------------------------------
# Full forward pass (layout glue in plain JAX, everything hot in Pallas)
# ---------------------------------------------------------------------------

def arcface_forward(x_nchw, params):
    B, Cin, H, W = x_nchw.shape
    assert Cin == 1
    KH = KW = 7
    S = 2
    P = 3
    OH = (H + 2 * P - KH) // S + 1
    OW = (W + 2 * P - KW) // S + 1
    nP = OH * OW
    K = KH * KW                                                   # 49 (unpadded)

    conv_w = params["conv_w"]                                     # [64, 7, 7]
    C = conv_w.shape[0]
    F = params["lin_w"].shape[1]

    C_PAD = _round_up(C, 128)
    F_PAD = _round_up(F, 128)

    # ---- im2col in bf16 (cast first so XLA builds/pads patches in half bytes)
    x = x_nchw[:, 0].astype(jnp.bfloat16)                         # [B, H, W]
    xp = jnp.pad(x, ((0, 0), (P, P), (P, P)))
    patches = [
        xp[:, kh:kh + S * OH:S, kw:kw + S * OW:S]                 # [B, OH, OW]
        for kh in range(KH) for kw in range(KW)
    ]
    cols = jnp.stack(patches, axis=-1).reshape(B, nP, K)          # [B, nP, 49] bf16

    # Spatial tiling: large tiles (<=2048 rows) to amortize per-step overhead
    # while keeping per-block VMEM tiny (<~2.5 MiB) even on v5e's 16 MiB limit.
    tile_p = min(2048, _round_up(nP, 8))
    P_pad = _round_up(nP, tile_p)
    # Edge-replicate padding rows (valid rows -> max-neutral, no in-kernel mask).
    cols = jnp.pad(cols, ((0, 0), (0, P_pad - nP), (0, 0)), mode="edge")

    # Conv weight -> [49, C_PAD] bf16 (K ordering kh*KW+kw matches im2col).
    w2d = conv_w.reshape(C, K).T                                  # [49, 64]
    w2d = jnp.pad(w2d, ((0, 0), (0, C_PAD - C))).astype(jnp.bfloat16)

    # Fold eval-mode BatchNorm1d into the head Linear (host side, f32 prep).
    inv_std = 1.0 / jnp.sqrt(params["bn_var"] + 1e-5)             # [F]
    scale = params["bn_gamma"] * inv_std                          # [F]
    w_head = params["lin_w"] * scale[None, :]                     # [C, F]
    b_head = (params["lin_b"] - params["bn_mean"]) * scale + params["bn_beta"]
    w_head = jnp.pad(w_head, ((0, C_PAD - C), (0, F_PAD - F))).astype(jnp.bfloat16)
    b_head = jnp.pad(b_head, (0, F_PAD - F))[None, :].astype(jnp.float32)

    out = arcface_fused_pallas(cols, w2d, w_head, b_head, tile_p=tile_p)
    return out[:, :F]


# ---------------------------------------------------------------------------
# Deterministic parameter init (mirrors the module's __init__)
# ---------------------------------------------------------------------------

def init_params(key, features=64, out_features=32):
    k_conv, k_lin = jax.random.split(key, 2)
    # Replaced conv1: Conv2d(1, 64, 7, stride=2, pad=3, bias=False).
    # (Original copies the channel-mean of pretrained weights; here we init
    #  deterministically in-script.)
    conv_w = 0.1 * jax.random.normal(k_conv, (features, 7, 7), jnp.float32)

    # Head linear: xavier_uniform weight, zero bias (stored as [in, out]).
    bound = (6.0 / (features + out_features)) ** 0.5
    lin_w = jax.random.uniform(k_lin, (features, out_features), jnp.float32,
                               -bound, bound)
    lin_b = jnp.zeros((out_features,), jnp.float32)

    # BatchNorm1d: weight=1, bias=0, running_mean=0, running_var=1 (eval).
    bn_gamma = jnp.ones((out_features,), jnp.float32)
    bn_beta = jnp.zeros((out_features,), jnp.float32)
    bn_mean = jnp.zeros((out_features,), jnp.float32)
    bn_var = jnp.ones((out_features,), jnp.float32)

    return dict(conv_w=conv_w, lin_w=lin_w, lin_b=lin_b,
                bn_gamma=bn_gamma, bn_beta=bn_beta,
                bn_mean=bn_mean, bn_var=bn_var)


if __name__ == "__main__":
    key = jax.random.PRNGKey(0)
    k_params, k_x = jax.random.split(key)

    B, H, W = 2, 32, 32
    out_features = 32
    params = init_params(k_params, features=64, out_features=out_features)
    x = jax.random.normal(k_x, (B, 1, H, W), jnp.float32)         # NCHW grayscale

    out = jax.jit(arcface_forward)(x, params)
    out = jax.block_until_ready(out)
    assert out.shape == (B, out_features), out.shape
    assert bool(jnp.all(jnp.isfinite(out)))
    print("KERNEL_OK")
</pallas_src>

<mosaic_0001>
module attributes {stable_mosaic.version = 11 : i64} {
  func.func @fused_kernel(%arg0: i32, %arg1: i32, %arg2: memref<1x256x49xbf16, #tpu.memory_space<vmem>>, %arg3: memref<49x128xbf16, #tpu.memory_space<vmem>>, %arg4: memref<128x128xbf16, #tpu.memory_space<vmem>>, %arg5: memref<1x128xf32, #tpu.memory_space<vmem>>, %arg6: memref<1x1x128xf32, #tpu.memory_space<vmem>>, %arg7: memref<8x128xf32, #tpu.memory_space<vmem>>) attributes {dimension_semantics = [#tpu.dimension_semantics<parallel>, #tpu.dimension_semantics<arbitrary>], iteration_bounds = array<i64: 2, 1>, scalar_prefetch = 0 : i64, scratch_operands = 1 : i64, tpu.core_type = #tpu.core_type<tc>, window_params = [{transform_indices = @transform_0, window_bounds = array<i64: 1, 256, 49>}, {pipeline_mode = #tpu.pipeline_mode<synchronous>, transform_indices = @transform_1, window_bounds = array<i64: 49, 128>}, {pipeline_mode = #tpu.pipeline_mode<synchronous>, transform_indices = @transform_2, window_bounds = array<i64: 128, 128>}, {pipeline_mode = #tpu.pipeline_mode<synchronous>, transform_indices = @transform_3, window_bounds = array<i64: 1, 128>}, {transform_indices = @transform_4, window_bounds = array<i64: 1, 1, 128>}]} {
    %c0_i32 = arith.constant 0 : i32
    %0 = arith.cmpi eq, %arg1, %c0_i32 : i32
    %1 = arith.extui %0 : i1 to i32
    %c0_i32_0 = arith.constant 0 : i32
    %2 = arith.cmpi ne, %1, %c0_i32_0 : i32
    scf.if %2 {
      %cst_12 = arith.constant 0xFF800000 : f32
      %15 = vector.broadcast %cst_12 : f32 to vector<8x128xf32>
      %c0_13 = arith.constant 0 : index
      %c0_14 = arith.constant 0 : index
      %16 = vector.load %arg7[%c0_13, %c0_14] : memref<8x128xf32, #tpu.memory_space<vmem>>, vector<8x128xf32>
      tpu.vector_store %arg7[%c0_13, %c0_14], %15 {strides = array<i32>} : memref<8x128xf32, #tpu.memory_space<vmem>>, vector<8x128xf32>,
    } else {
    }
    %c0 = arith.constant 0 : index
    %c0_1 = arith.constant 0 : index
    %c0_2 = arith.constant 0 : index
    %3 = vector.load %arg2[%c0, %c0_1, %c0_2] : memref<1x256x49xbf16, #tpu.memory_space<vmem>>, vector<1x256x49xbf16>
    %4 = vector.shape_cast %3 : vector<1x256x49xbf16> to vector<256x49xbf16>
    %c0_3 = arith.constant 0 : index
    %c0_4 = arith.constant 0 : index
    %5 = vector.load %arg3[%c0_3, %c0_4] : memref<49x128xbf16, #tpu.memory_space<vmem>>, vector<49x128xbf16>
    %cst = arith.constant dense<0.000000e+00> : vector<256x128xf32>
    %6 = tpu.matmul %4, %5, %cst {dimension_numbers = #tpu.dot_dimension_numbers<[1], [0], [0], [1], [0, 0, 1, 1], [], []>} : vector<256x49xbf16>, vector<49x128xbf16>, vector<256x128xf32> -> vector<256x128xf32>
    %7 = vector.shape_cast %6 : vector<256x128xf32> to vector<32x8x128xf32>
    %cst_5 = arith.constant dense<0xFF800000> : vector<8x128xf32>
    %8 = vector.multi_reduction <maximumf>, %7, %cst_5 [0] : vector<32x8x128xf32> to vector<8x128xf32>
    %c0_6 = arith.constant 0 : index
    %c0_7 = arith.constant 0 : index
    %9 = vector.load %arg7[%c0_6, %c0_7] : memref<8x128xf32, #tpu.memory_space<vmem>>, vector<8x128xf32>
    %10 = arith.maximumf %9, %8 : vector<8x128xf32>
    %c0_8 = arith.constant 0 : index
    %c0_9 = arith.constant 0 : index
    %11 = vector.load %arg7[%c0_8, %c0_9] : memref<8x128xf32, #tpu.memory_space<vmem>>, vector<8x128xf32>
    tpu.vector_store %arg7[%c0_8, %c0_9], %10 {strides = array<i32>} : memref<8x128xf32, #tpu.memory_space<vmem>>, vector<8x128xf32>,
    %c0_i32_10 = arith.constant 0 : i32
    %12 = arith.cmpi eq, %arg1, %c0_i32_10 : i32
    %13 = arith.extui %12 : i1 to i32
    %c0_i32_11 = arith.constant 0 : i32
    %14 = arith.cmpi ne, %13, %c0_i32_11 : i32
    scf.if %14 {
      %c0_12 = arith.constant 0 : index
      %c0_13 = arith.constant 0 : index
      %15 = vector.load %arg7[%c0_12, %c0_13] : memref<8x128xf32, #tpu.memory_space<vmem>>, vector<8x128xf32>
      %cst_14 = arith.constant dense<0xFF800000> : vector<128xf32>
      %16 = vector.multi_reduction <maximumf>, %15, %cst_14 [0] : vector<8x128xf32> to vector<128xf32>
      %17 = vector.shape_cast %16 : vector<128xf32> to vector<1x128xf32>
      %18 = arith.truncf %17 : vector<1x128xf32> to vector<1x128xbf16>
      %c0_15 = arith.constant 0 : index
      %c0_16 = arith.constant 0 : index
      %19 = vector.load %arg4[%c0_15, %c0_16] : memref<128x128xbf16, #tpu.memory_space<vmem>>, vector<128x128xbf16>
      %cst_17 = arith.constant dense<0.000000e+00> : vector<1x128xf32>
      %20 = tpu.matmul %18, %19, %cst_17 {dimension_numbers = #tpu.dot_dimension_numbers<[1], [0], [0], [1], [0, 0, 1, 1], [], []>} : vector<1x128xbf16>, vector<128x128xbf16>, vector<1x128xf32> -> vector<1x128xf32>
      %c0_18 = arith.constant 0 : index
      %c0_19 = arith.constant 0 : index
      %21 = vector.load %arg5[%c0_18, %c0_19] : memref<1x128xf32, #tpu.memory_space<vmem>>, vector<1x128xf32>
      %22 = arith.addf %20, %21 : vector<1x128xf32>
      %c0_20 = arith.constant 0 : index
      %c0_21 = arith.constant 0 : index
      %c0_22 = arith.constant 0 : index
      %23 = vector.load %arg6[%c0_20, %c0_21, %c0_22] : memref<1x1x128xf32, #tpu.memory_space<vmem>>, vector<1x1x128xf32>
      %24 = vector.shape_cast %23 : vector<1x1x128xf32> to vector<1x128xf32>
      %25 = vector.shape_cast %22 : vector<1x128xf32> to vector<1x1x128xf32>
      tpu.vector_store %arg6[%c0_20, %c0_21, %c0_22], %25 {strides = array<i32>} : memref<1x1x128xf32, #tpu.memory_space<vmem>>, vector<1x1x128xf32>,
    } else {
    }
    return
  }
  func.func @transform_0(%arg0: i32, %arg1: i32) -> (i32, i32, i32) {
    %c0_i32 = arith.constant 0 : i32
    %c0_i32_0 = arith.constant 0 : i32
    return %arg0, %arg1, %c0_i32 : i32, i32, i32
  }
  func.func @transform_1(%arg0: i32, %arg1: i32) -> (i32, i32) {
    %c0_i32 = arith.constant 0 : i32
    %c0_i32_0 = arith.constant 0 : i32
    %c0_i32_1 = arith.constant 0 : i32
    return %c0_i32, %c0_i32_0 : i32, i32
  }
  func.func @transform_2(%arg0: i32, %arg1: i32) -> (i32, i32) {
    %c0_i32 = arith.constant 0 : i32
    %c0_i32_0 = arith.constant 0 : i32
    %c0_i32_1 = arith.constant 0 : i32
    return %c0_i32, %c0_i32_0 : i32, i32
  }
  func.func @transform_3(%arg0: i32, %arg1: i32) -> (i32, i32) {
    %c0_i32 = arith.constant 0 : i32
    %c0_i32_0 = arith.constant 0 : i32
    %c0_i32_1 = arith.constant 0 : i32
    return %c0_i32, %c0_i32_0 : i32, i32
  }
  func.func @transform_4(%arg0: i32, %arg1: i32) -> (i32, i32, i32) {
    %c0_i32 = arith.constant 0 : i32
    %c0_i32_0 = arith.constant 0 : i32
    %c0_i32_1 = arith.constant 0 : i32
    return %arg0, %c0_i32, %c0_i32_0 : i32, i32, i32
  }
}

</mosaic_0001>

<llo_original>
// kernel: arcface_forward.1
$region0: #{arcface_forward.1}
  #allocation0 [shape = 'u32[]', space=smem, size = 0x4, offset = 0x4, fixed_abs, tag = 'smem constant byte address 0x4 - core index']
  #allocation1 [shape = 'u32[144,128]{1,0:T(1,128)}', space=vmem, size = 0x12000, scoped, tag = 'internal scratch']
  #allocation2 [shape = 'f32[8,128]{1,0:T(8,128)}', space=vmem, size = 0x1000, scoped, tag = 'scratch operand']
  %s0 = inlined_call_operand.vmem [shape: bf16[2,256,49], index: 0, kind: input, shape index: {}]
  %s1 = inlined_call_operand.vmem [shape: bf16[49,128], index: 1, kind: input, shape index: {}]
  %s2 = inlined_call_operand.vmem [shape: bf16[128,128], index: 2, kind: input, shape index: {}]
  %s3 = inlined_call_operand.vmem [shape: f32[1,128], index: 3, kind: input, shape index: {}]
  %s4 = inlined_call_operand.hbm [shape: f32[2,1,128], index: 4, kind: output, shape index: {}]
  %s5 = sld [smem:[#allocation0]]
  $region57: #{arcface_forward.1} parent=0
    _
  %s7 = ssub.s32 1, %s5
  %s8 = scalar_select 0, %s7, %s5
  $region1: #{arcface_forward.1} parent=0
    #allocation3 [shape = 'u8[1024]{0}', space=vmem, size = 0x400, scoped, tag = 'output window, operand 0']
    #allocation4 [shape = 's32[2]{0}', space=sflag, size = 0x8, scoped, tag = 'scoped memory for arcface_forward.1']
    %9 = vsyncpa [#allocation4], 0
    %s10 = scalar_lea.sflag [#allocation4], 1
    %11 = vsyncpa %s10, 0
    loop: start=0, step=1, limit=4
    $region2: #{arcface_forward.1} parent=1 // loop_pre_header
      _
    $region3: #{arcface_forward.1} parent=1 // loop_header
      %s13 = sphi 0, %s17
      %p14 = scmp.ge.s32.totalorder %s13, 4
      %s20 = sphi 0, %s32
      %s21 = sphi 0, %s28
      %s22 = sphi 0, %s20
      %s23 = sphi 0, %s21
      %s24 = sphi 0, %s22
      %s25 = sphi 0, %s23
      %s37 = sphi 0, %s39
      %s40 = sphi 0, %s37
      %s41 = sphi 0, %s40
      %s57 = sphi 0, %s41
      %s61 = sphi 0, %s61
      %s63 = sphi 0, %s61
      %s64 = sphi 0, %s63
      %s78 = sphi 0, %s64
      %s82 = sphi 0, %s82
      %s84 = sphi 0, %s82
      %s85 = sphi 0, %s84
      %s99 = sphi 0, %s85
      %s103 = sphi 0, %s103
      %s105 = sphi 0, %s103
      %s106 = sphi 0, %s105
      %s120 = sphi 0, %s106
      %s126 = sphi 0, %s128
      %s129 = sphi 0, %s126
      %s130 = sphi 0, %s129
      %s146 = sphi 0, %s130
    $region4: #{arcface_forward.1} parent=1 // loop_header_branch
      %16 = sbr.rel (%p14) target = $region8
    $region5: #{arcface_forward.1} parent=1 // loop_body
      %s18 = ssub.s32 %s13, 1
      %s19 = ssub.s32 %s13, 2
      %s26 = sadd.s32 1, %s21
      %p27 = scmp.ge.s32.totalorder %s26, 1
      %s28 = scalar_select %p27, 0, %s26
      %s29 = sadd.s32 1, %s20
      %s30 = scalar_select %p27, %s29, %s20
      %p31 = scmp.ge.s32.totalorder %s30, 2
      %s32 = scalar_select %p31, 0, %s30
      %s33 = ssub.s32 %s20, %s32
      %s34 = ssub.s32 %s21, %s28
      %s35 = sor.u32 %s33, %s34
      %p36 = scmp.eq.s32.totalorder %s35, 0
      %s38 = sadd.s32 %s37, 1
      %s39 = scalar_select %p36, %s37, %s38
      %p42 = pneg %p36
      %p43 = scmp.eq.s32.totalorder %s13, 1
      %p44 = por %p42, %p43
      %p45 = scmp.ne.s32.totalorder %s37, %s40
      %p46 = scmp.eq.s32.totalorder %s13, 0
      %p47 = por %p45, %p46
      %p48 = scmp.ne.s32.totalorder %s37, %s40
      %p49 = scmp.eq.s32.totalorder %s18, 1
      %p50 = por %p48, %p49
      %p51 = scmp.ne.s32.totalorder %s40, %s41
      %p52 = scmp.eq.s32.totalorder %s18, 0
      %p53 = por %p51, %p52
      %p54 = scmp.ne.s32.totalorder %s40, %s41
      %p55 = scmp.eq.s32.totalorder %s19, 1
      %p56 = por %p54, %p55
      %p58 = scmp.ne.s32.totalorder %s41, %s57
      %p59 = scmp.eq.s32.totalorder %s19, 0
      %p60 = por %p58, %p59
      %s62 = sadd.s32 %s61, 1
      %p65 = scmp.eq.s32.totalorder %s13, 1
      %p66 = scmp.ne.s32.totalorder %s61, %s63
      %p67 = scmp.eq.s32.totalorder %s13, 0
      %p68 = por %p66, %p67
      %p69 = scmp.ne.s32.totalorder %s61, %s63
      %p70 = scmp.eq.s32.totalorder %s18, 1
      %p71 = por %p69, %p70
      %p72 = scmp.ne.s32.totalorder %s63, %s64
      %p73 = scmp.eq.s32.totalorder %s18, 0
      %p74 = por %p72, %p73
      %p75 = scmp.ne.s32.totalorder %s63, %s64
      %p76 = scmp.eq.s32.totalorder %s19, 1
      %p77 = por %p75, %p76
      %p79 = scmp.ne.s32.totalorder %s64, %s78
      %p80 = scmp.eq.s32.totalorder %s19, 0
      %p81 = por %p79, %p80
      %s83 = sadd.s32 %s82, 1
      %p86 = scmp.eq.s32.totalorder %s13, 1
      %p87 = scmp.ne.s32.totalorder %s82, %s84
      %p88 = scmp.eq.s32.totalorder %s13, 0
      %p89 = por %p87, %p88
      %p90 = scmp.ne.s32.totalorder %s82, %s84
      %p91 = scmp.eq.s32.totalorder %s18, 1
      %p92 = por %p90, %p91
      %p93 = scmp.ne.s32.totalorder %s84, %s85
      %p94 = scmp.eq.s32.totalorder %s18, 0
      %p95 = por %p93, %p94
      %p96 = scmp.ne.s32.totalorder %s84, %s85
      %p97 = scmp.eq.s32.totalorder %s19, 1
      %p98 = por %p96, %p97
      %p100 = scmp.ne.s32.totalorder %s85, %s99
      %p101 = scmp.eq.s32.totalorder %s19, 0
      %p102 = por %p100, %p101
      %s104 = sadd.s32 %s103, 1
      %p107 = scmp.eq.s32.totalorder %s13, 1
      %p108 = scmp.ne.s32.totalorder %s103, %s105
      %p109 = scmp.eq.s32.totalorder %s13, 0
      %p110 = por %p108, %p109
      %p111 = scmp.ne.s32.totalorder %s103, %s105
      %p112 = scmp.eq.s32.totalorder %s18, 1
      %p113 = por %p111, %p112
      %p114 = scmp.ne.s32.totalorder %s105, %s106
      %p115 = scmp.eq.s32.totalorder %s18, 0
      %p116 = por %p114, %p115
      %p117 = scmp.ne.s32.totalorder %s105, %s106
      %p118 = scmp.eq.s32.totalorder %s19, 1
      %p119 = por %p117, %p118
      %p121 = scmp.ne.s32.totalorder %s106, %s120
      %p122 = scmp.eq.s32.totalorder %s19, 0
      %p123 = por %p121, %p122
      %s124 = ssub.s32 %s20, %s32
      %p125 = scmp.eq.s32.totalorder %s124, 0
      %s127 = sadd.s32 %s126, 1
      %s128 = scalar_select %p125, %s126, %s127
      %p131 = pneg %p125
      %p132 = scmp.eq.s32.totalorder %s13, 1
      %p133 = por %p131, %p132
      %p134 = scmp.ne.s32.totalorder %s126, %s129
      %p135 = scmp.eq.s32.totalorder %s13, 0
      %p136 = por %p134, %p135
      %p137 = scmp.ne.s32.totalorder %s126, %s129
      %p138 = scmp.eq.s32.totalorder %s18, 1
      %p139 = por %p137, %p138
      %p140 = scmp.ne.s32.totalorder %s129, %s130
      %p141 = scmp.eq.s32.totalorder %s18, 0
      %p142 = por %p140, %p141
      %p143 = scmp.ne.s32.totalorder %s129, %s130
      %p144 = scmp.eq.s32.totalorder %s19, 1
      %p145 = por %p143, %p144
      %p147 = scmp.ne.s32.totalorder %s130, %s146
      %p148 = scmp.eq.s32.totalorder %s19, 0
      %p149 = por %p147, %p148
      %p150 = scmp.le.s32.totalorder 1, %s13
      %p151 = scmp.lt.s32.totalorder %s13, 3
      %p152 = pnand %p150, %p151
      %p153 = pneg %p152
      // Predicated region
      $region9: #{arcface_forward.1} parent=5 // pred_check
        _
      $region10: #{arcface_forward.1} parent=5 // pred_check_branch
        %155 = sbr.rel (%p152) target = $region12
      $region11: #{arcface_forward.1} parent=5 // pred_region
        %s156 = ssub.s32 %s13, 1
        // Predicated region
        $region13: #{arcface_forward.1} parent=11 // pred_check
          %p157 = pneg %p74
        $region14: #{arcface_forward.1} parent=11 // pred_check_branch
          %159 = sbr.rel (%p157) target = $region16
        $region15: #{arcface_forward.1} parent=11 // pred_region
          _
        $region16: #{arcface_forward.1} parent=11 // pred_fallthru
          _
        // Predicated region
        $region17: #{arcface_forward.1} parent=11 // pred_check
          %p160 = pneg %p95
        $region18: #{arcface_forward.1} parent=11 // pred_check_branch
          %162 = sbr.rel (%p160) target = $region20
        $region19: #{arcface_forward.1} parent=11 // pred_region
          _
        $region20: #{arcface_forward.1} parent=11 // pred_fallthru
          _
        // Predicated region
        $region21: #{arcface_forward.1} parent=11 // pred_check
          %p163 = pneg %p116
        $region22: #{arcface_forward.1} parent=11 // pred_check_branch
          %165 = sbr.rel (%p163) target = $region24
        $region23: #{arcface_forward.1} parent=11 // pred_region
          _
        $region24: #{arcface_forward.1} parent=11 // pred_fallthru
          _
      $region12: #{arcface_forward.1} parent=5 // pred_fallthru
        _
      %p166 = scmp.lt.s32.totalorder %s13, 2
      // Predicated region
      $region25: #{arcface_forward.1} parent=5 // pred_check
        %p167 = pneg %p166
      $region26: #{arcface_forward.1} parent=5 // pred_check_branch
        %169 = sbr.rel (%p167) target = $region28
      $region27: #{arcface_forward.1} parent=5 // pred_region
        // Predicated region
        $region29: #{arcface_forward.1} parent=27 // pred_check
          %p170 = pneg %p47
        $region30: #{arcface_forward.1} parent=27 // pred_check_branch
          %172 = sbr.rel (%p170) target = $region32
        $region31: #{arcface_forward.1} parent=27 // pred_region
          %s173 = smul.u32 32, %s21
          %p174 = scmp.lt.s32.totalorder %s20, 1
          %s175 = scalar_select %p174, %s20, 1
          %p176 = scmp.lt.s32.totalorder %s173, 31
          %s177 = scalar_select %p176, %s173, 31
          %s178 = smul.addr %s175, 32
          %s179 = sadd.s32 %s177, %s178
          %s180 = smul.addr %s179, 4
          %s181 = scalar_lea.vmem %s0, %s180
          %s182 = smul.u32 32, %s21
        $region32: #{arcface_forward.1} parent=27 // pred_fallthru
          _
      $region28: #{arcface_forward.1} parent=5 // pred_fallthru
        _
      %p183 = scmp.le.s32.totalorder 1, %s13
      %p184 = scmp.lt.s32.totalorder %s13, 3
      %p185 = pnand %p183, %p184
      %p186 = pneg %p185
      // Predicated region
      $region33: #{arcface_forward.1} parent=5 // pred_check
        _
      $region34: #{arcface_forward.1} parent=5 // pred_check_branch
        %188 = sbr.rel (%p185) target = $region36
      $region35: #{arcface_forward.1} parent=5 // pred_region
        %s189 = ssub.s32 %s13, 1
        %s190 = smul.u32 32, %s23
        %p191 = scmp.lt.s32.totalorder %s22, 1
        %s192 = scalar_select %p191, %s22, 1
        %p193 = scmp.lt.s32.totalorder %s190, 31
        %s194 = scalar_select %p193, %s190, 31
        %s195 = smul.addr %s192, 32
        %s196 = sadd.s32 %s194, %s195
        %s197 = smul.addr %s196, 4
        %s198 = scalar_lea.vmem %s0, %s197
        %p199 = pneg %p53
        %p200 = pneg %p50
        %p201 = pneg %p74
        %p202 = pneg %p71
        %p203 = pneg %p95
        %p204 = pneg %p92
        %p205 = pneg %p116
        %p206 = pneg %p113
        %p207 = pneg %p142
        %p208 = pneg %p139
        %s209 = sand.u32 %s129, 1
        %s210 = scalar_lea.sflag [#allocation4], %s209
        %s211 = sand.u32 %s129, 1
        %s212 = scalar_lea.vmem [#allocation3], %s211
        %s213 = smul.u32 32, %s23
        %p214 = scmp.lt.s32.totalorder %s22, 1
        %s215 = scalar_select %p214, %s22, 1
        %p216 = scmp.lt.s32.totalorder %s213, 31
        %s217 = scalar_select %p216, %s213, 31
        %s218 = smul.addr %s215, 32
        %s219 = sadd.s32 %s217, %s218
        %s220 = smul.addr %s219, 4
        %s221 = scalar_lea.vmem %s0, %s220
        %s222 = smul.u32 32, %s23
        %p224 = scmp.eq.s32.totalorder %s23, 0
        // Predicated region
        $region37: #{arcface_forward.1} parent=35 // pred_check
          %p225 = pneg %p224
        $region38: #{arcface_forward.1} parent=35 // pred_check_branch
          %227 = sbr.rel (%p225) target = $region40
        $region39: #{arcface_forward.1} parent=35 // pred_region
          %228 = vst [vmem:[#allocation2] sm:$0xff] -inf
        $region40: #{arcface_forward.1} parent=35 // pred_fallthru
          _
        %v229 = vld [vmem:[%s221] sm:$0xf]
        %v230 = vld [vmem:[%s221 + $0x4] sm:$0xf]
        %v231 = vld [vmem:[%s221 + $0x8] sm:$0xf]
        %v232 = vld [vmem:[%s221 + $0xc] sm:$0xf]
        %v233 = vld [vmem:[%s221 + $0x10] sm:$0xf]
        %v234 = vld [vmem:[%s221 + $0x14] sm:$0xf]
        %v235 = vld [vmem:[%s221 + $0x18] sm:$0xf]
        %v236 = vld [vmem:[%s221 + $0x1c] sm:$0xf]
        %v237 = vld [vmem:[%s221 + $0x20] sm:$0xf]
        %v238 = vld [vmem:[%s221 + $0x24] sm:$0xf]
        %v239 = vld [vmem:[%s221 + $0x28] sm:$0xf]
        %v240 = vld [vmem:[%s221 + $0x2c] sm:$0xf]
        %v241 = vld [vmem:[%s221 + $0x30] sm:$0xf]
        %v242 = vld [vmem:[%s221 + $0x34] sm:$0xf]
        %v243 = vld [vmem:[%s221 + $0x38] sm:$0xf]
        %v244 = vld [vmem:[%s221 + $0x3c] sm:$0xf]
        %v245 = vld [vmem:[%s221 + $0x40] sm:$0xf]
        %v246 = vld [vmem:[%s221 + $0x44] sm:$0xf]
        %v247 = vld [vmem:[%s221 + $0x48] sm:$0xf]
        %v248 = vld [vmem:[%s221 + $0x4c] sm:$0xf]
        %v249 = vld [vmem:[%s221 + $0x50] sm:$0xf]
        %v250 = vld [vmem:[%s221 + $0x54] sm:$0xf]
        %v251 = vld [vmem:[%s221 + $0x58] sm:$0xf]
        %v252 = vld [vmem:[%s221 + $0x5c] sm:$0xf]
        %v253 = vld [vmem:[%s221 + $0x60] sm:$0xf]
        %v254 = vld [vmem:[%s221 + $0x64] sm:$0xf]
        %v255 = vld [vmem:[%s221 + $0x68] sm:$0xf]
        %v256 = vld [vmem:[%s221 + $0x6c] sm:$0xf]
        %v257 = vld [vmem:[%s221 + $0x70] sm:$0xf]
        %v258 = vld [vmem:[%s221 + $0x74] sm:$0xf]
        %v259 = vld [vmem:[%s221 + $0x78] sm:$0xf]
        %v260 = vld [vmem:[%s221 + $0x7c] sm:$0xf]
        %v261 = vld [vmem:[%s1] sm:$0xf]
        %v262 = vld [vmem:[%s1 + $0x4] sm:$0xf]
        %v263 = vld [vmem:[%s1 + $0x8] sm:$0xf]
        %v264 = vld [vmem:[%s1 + $0xc] sm:$0xf]
        %v265 = vld [vmem:[%s1 + $0x10] sm:$0xf]
        %v266 = vld [vmem:[%s1 + $0x14] sm:$0xf]
        %v267 = vld [vmem:[%s1 + $0x18] sm:$0x1]
        %v300 = vunpack.c.l.b16 %v229
        %v301 = vunpack.c.l.b16 %v230
        %v302 = vunpack.c.l.b16 %v231
        %v303 = vunpack.c.l.b16 %v232
        %v304 = vunpack.c.l.b16 %v233
        %v305 = vunpack.c.l.b16 %v234
        %v306 = vunpack.c.l.b16 %v235
        %v307 = vunpack.c.l.b16 %v236
        %v308 = vunpack.c.l.b16 %v237
        %v309 = vunpack.c.l.b16 %v238
        %v310 = vunpack.c.l.b16 %v239
        %v311 = vunpack.c.l.b16 %v240
        %v312 = vunpack.c.l.b16 %v241
        %v313 = vunpack.c.l.b16 %v242
        %v314 = vunpack.c.l.b16 %v243
        %v315 = vunpack.c.l.b16 %v244
        %v316 = vunpack.c.l.b16 %v245
        %v317 = vunpack.c.l.b16 %v246
        %v318 = vunpack.c.l.b16 %v247
        %v319 = vunpack.c.l.b16 %v248
        %v320 = vunpack.c.l.b16 %v249
        %v321 = vunpack.c.l.b16 %v250
        %v322 = vunpack.c.l.b16 %v251
        %v323 = vunpack.c.l.b16 %v252
        %v324 = vunpack.c.l.b16 %v253
        %v325 = vunpack.c.l.b16 %v254
        %v326 = vunpack.c.l.b16 %v255
        %v327 = vunpack.c.l.b16 %v256
        %v328 = vunpack.c.l.b16 %v257
        %v329 = vunpack.c.l.b16 %v258
        %v330 = vunpack.c.l.b16 %v259
        %v331 = vunpack.c.l.b16 %v260
        %v332 = vpack.c.b16 %v301, %v300
        %v333 = vpack.c.b16 %v303, %v302
        %v334 = vpack.c.b16 %v305, %v304
        %v335 = vpack.c.b16 %v307, %v306
        %v336 = vpack.c.b16 %v309, %v308
        %v337 = vpack.c.b16 %v311, %v310
        %v338 = vpack.c.b16 %v313, %v312
        %v339 = vpack.c.b16 %v315, %v314
        %v340 = vpack.c.b16 %v317, %v316
        %v341 = vpack.c.b16 %v319, %v318
        %v342 = vpack.c.b16 %v321, %v320
        %v343 = vpack.c.b16 %v323, %v322
        %v344 = vpack.c.b16 %v325, %v324
        %v345 = vpack.c.b16 %v327, %v326
        %v346 = vpack.c.b16 %v329, %v328
        %v347 = vpack.c.b16 %v331, %v330
        %v355 = vunpack.c.l.b16 %v261
        %v356 = vunpack.c.l.b16 %v262
        %v357 = vunpack.c.l.b16 %v263
        %v358 = vunpack.c.l.b16 %v264
        %v359 = vunpack.c.l.b16 %v265
        %v360 = vunpack.c.l.b16 %v266
        %v361 = vunpack.c.l.b16 %v267
        %v362 = vpack.c.b16 %v356, %v355
        %v363 = vpack.c.b16 %v358, %v357
        %v364 = vpack.c.b16 %v360, %v359
        %v365 = vpack.c.b16 %v361, %v361
        %vm369 = vcmask 400384
        %v371 = vsel %vm369, %v332, 0
        %v374 = vsel %vm369, %v333, 0
        %v377 = vsel %vm369, %v334, 0
        %v380 = vsel %vm369, %v335, 0
        %v383 = vsel %vm369, %v336, 0
        %v386 = vsel %vm369, %v337, 0
        %v389 = vsel %vm369, %v338, 0
        %v392 = vsel %vm369, %v339, 0
        %v395 = vsel %vm369, %v340, 0
        %v398 = vsel %vm369, %v341, 0
        %v401 = vsel %vm369, %v342, 0
        %v404 = vsel %vm369, %v343, 0
        %v407 = vsel %vm369, %v344, 0
        %v410 = vsel %vm369, %v345, 0
        %v413 = vsel %vm369, %v346, 0
        %v416 = vsel %vm369, %v347, 0
        %vm418 = vcmask 1040384
        %v419 = vsel 0, 4294967295, 65535
        %v420 = vsel %vm418, %v419, 0
        %v422 = vand.u32 %v365, %v420
        %424 = vmatprep.subr.bf16.mxu0 0
        %425 = vmatpush1.bf16.msra.mxu0 %v362
        %426 = vmatprep.subr.bf16.mxu0 0
        %427 = vmatpush1.bf16.msra.mxu0 %v363
        %428 = vmatprep.subr.bf16.mxu0 0
        %429 = vmatpush1.bf16.msra.mxu0 %v364
        %430 = vmatprep.subr.bf16.mxu0 0
        %431 = vmatpush1.bf16.msra.mxu0 %v422
        %432 = vmatprep.subr.bf16.mxu0 0
        %433 = vmatpush1.bf16.msra.mxu0 0
        %434 = vmatprep.subr.bf16.mxu0 0
        %435 = vmatpush1.bf16.msra.mxu0 0
        %436 = vmatprep.subr.bf16.mxu0 0
        %437 = vmatpush1.bf16.msra.mxu0 0
        %438 = vmatprep.subr.bf16.mxu0 0
        %439 = vmatpush1.bf16.msra.mxu0 0
        %440 = vmatprep.subr.bf16.mxu0 0
        %441 = vmatpush1.bf16.msra.mxu0 0
        %442 = vmatprep.subr.bf16.mxu0 0
        %443 = vmatpush1.bf16.msra.mxu0 0
        %444 = vmatprep.subr.bf16.mxu0 0
        %445 = vmatpush1.bf16.msra.mxu0 0
        %446 = vmatprep.subr.bf16.mxu0 0
        %447 = vmatpush1.bf16.msra.mxu0 0
        %448 = vmatprep.subr.bf16.mxu0 0
        %449 = vmatpush1.bf16.msra.mxu0 0
        %450 = vmatprep.subr.bf16.mxu0 0
        %451 = vmatpush1.bf16.msra.mxu0 0
        %452 = vmatprep.subr.bf16.mxu0 0
        %453 = vmatpush1.bf16.msra.mxu0 0
        %454 = vmatprep.subr.bf16.mxu0 0
        %455 = vmatpush1.bf16.msra.mxu0 0
        %456 = vmatprep.mubr.bf16.mxu0 0
        %457 = vmatmul.mubr.bf16.gmra.mrb[0].mxu0 %v371
        %v458 = vpop.f32.mrb[0].mxu0
        %v459 = vadd.f32 0.0, %v458
        %v460 = vpop.f32.mrb[0].mxu0
        %v461 = vpop.f32.mrb[0].mxu0
        %v462 = vadd.f32 0.0, %v461
        %v463 = vpop.f32.mrb[0].mxu0
        %464 = vmatprep.mubr.bf16.mxu0 0
        %465 = vmatmul.mubr.bf16.gmra.mrb[0].mxu0 %v374
        %v466 = vpop.f32.mrb[0].mxu0
        %v467 = vadd.f32 0.0, %v466
        %v468 = vpop.f32.mrb[0].mxu0
        %v469 = vpop.f32.mrb[0].mxu0
        %v470 = vadd.f32 0.0, %v469
        %v471 = vpop.f32.mrb[0].mxu0
        %472 = vmatprep.mubr.bf16.mxu0 0
        %473 = vmatmul.mubr.bf16.gmra.mrb[0].mxu0 %v377
        %v474 = vpop.f32.mrb[0].mxu0
        %v475 = vadd.f32 0.0, %v474
        %v476 = vpop.f32.mrb[0].mxu0
        %v477 = vpop.f32.mrb[0].mxu0
        %v478 = vadd.f32 0.0, %v477
        %v479 = vpop.f32.mrb[0].mxu0
        %480 = vmatprep.mubr.bf16.mxu0 0
        %481 = vmatmul.mubr.bf16.gmra.mrb[0].mxu0 %v380
        %v482 = vpop.f32.mrb[0].mxu0
        %v483 = vadd.f32 0.0, %v482
        %v484 = vpop.f32.mrb[0].mxu0
        %v485 = vpop.f32.mrb[0].mxu0
        %v486 = vadd.f32 0.0, %v485
        %v487 = vpop.f32.mrb[0].mxu0
        %488 = vmatprep.mubr.bf16.mxu0 0
        %489 = vmatmul.mubr.bf16.gmra.mrb[0].mxu0 %v383
        %v490 = vpop.f32.mrb[0].mxu0
        %v491 = vadd.f32 0.0, %v490
        %v492 = vpop.f32.mrb[0].mxu0
        %v493 = vpop.f32.mrb[0].mxu0
        %v494 = vadd.f32 0.0, %v493
        %v495 = vpop.f32.mrb[0].mxu0
        %496 = vmatprep.mubr.bf16.mxu0 0
        %497 = vmatmul.mubr.bf16.gmra.mrb[0].mxu0 %v386
        %v498 = vpop.f32.mrb[0].mxu0
        %v499 = vadd.f32 0.0, %v498
        %v500 = vpop.f32.mrb[0].mxu0
        %v501 = vpop.f32.mrb[0].mxu0
        %v502 = vadd.f32 0.0, %v501
        %v503 = vpop.f32.mrb[0].mxu0
        %504 = vmatprep.mubr.bf16.mxu0 0
        %505 = vmatmul.mubr.bf16.gmra.mrb[0].mxu0 %v389
        %v506 = vpop.f32.mrb[0].mxu0
        %v507 = vadd.f32 0.0, %v506
        %v508 = vpop.f32.mrb[0].mxu0
        %v509 = vpop.f32.mrb[0].mxu0
        %v510 = vadd.f32 0.0, %v509
        %v511 = vpop.f32.mrb[0].mxu0
        %512 = vmatprep.mubr.bf16.mxu0 0
        %513 = vmatmul.mubr.bf16.gmra.mrb[0].mxu0 %v392
        %v514 = vpop.f32.mrb[0].mxu0
        %v515 = vadd.f32 0.0, %v514
        %v516 = vpop.f32.mrb[0].mxu0
        %v517 = vpop.f32.mrb[0].mxu0
        %v518 = vadd.f32 0.0, %v517
        %v519 = vpop.f32.mrb[0].mxu0
        %520 = vmatprep.mubr.bf16.mxu0 0
        %521 = vmatmul.mubr.bf16.gmra.mrb[0].mxu0 %v395
        %v522 = vpop.f32.mrb[0].mxu0
        %v523 = vadd.f32 0.0, %v522
        %v524 = vpop.f32.mrb[0].mxu0
        %v525 = vpop.f32.mrb[0].mxu0
        %v526 = vadd.f32 0.0, %v525
        %v527 = vpop.f32.mrb[0].mxu0
        %528 = vmatprep.mubr.bf16.mxu0 0
        %529 = vmatmul.mubr.bf16.gmra.mrb[0].mxu0 %v398
        %v530 = vpop.f32.mrb[0].mxu0
        %v531 = vadd.f32 0.0, %v530
        %v532 = vpop.f32.mrb[0].mxu0
        %v533 = vpop.f32.mrb[0].mxu0
        %v534 = vadd.f32 0.0, %v533
        %v535 = vpop.f32.mrb[0].mxu0
        %536 = vmatprep.mubr.bf16.mxu0 0
        %537 = vmatmul.mubr.bf16.gmra.mrb[0].mxu0 %v401
        %v538 = vpop.f32.mrb[0].mxu0
        %v539 = vadd.f32 0.0, %v538
        %v540 = vpop.f32.mrb[0].mxu0
        %v541 = vpop.f32.mrb[0].mxu0
        %v542 = vadd.f32 0.0, %v541
        %v543 = vpop.f32.mrb[0].mxu0
        %544 = vmatprep.mubr.bf16.mxu0 0
        %545 = vmatmul.mubr.bf16.gmra.mrb[0].mxu0 %v404
        %v546 = vpop.f32.mrb[0].mxu0
        %v547 = vadd.f32 0.0, %v546
        %v548 = vpop.f32.mrb[0].mxu0
        %v549 = vpop.f32.mrb[0].mxu0
        %v550 = vadd.f32 0.0, %v549
        %v551 = vpop.f32.mrb[0].mxu0
        %552 = vmatprep.mubr.bf16.mxu0 0
        %553 = vmatmul.mubr.bf16.gmra.mrb[0].mxu0 %v407
        %v554 = vpop.f32.mrb[0].mxu0
        %v555 = vadd.f32 0.0, %v554
        %v556 = vpop.f32.mrb[0].mxu0
        %v557 = vpop.f32.mrb[0].mxu0
        %v558 = vadd.f32 0.0, %v557
        %v559 = vpop.f32.mrb[0].mxu0
        %560 = vmatprep.mubr.bf16.mxu0 0
        %561 = vmatmul.mubr.bf16.gmra.mrb[0].mxu0 %v410
        %v562 = vpop.f32.mrb[0].mxu0
        %v563 = vadd.f32 0.0, %v562
        %v564 = vpop.f32.mrb[0].mxu0
        %v565 = vpop.f32.mrb[0].mxu0
        %v566 = vadd.f32 0.0, %v565
        %v567 = vpop.f32.mrb[0].mxu0
        %568 = vmatprep.mubr.bf16.mxu0 0
        %569 = vmatmul.mubr.bf16.gmra.mrb[0].mxu0 %v413
        %v570 = vpop.f32.mrb[0].mxu0
        %v571 = vadd.f32 0.0, %v570
        %v572 = vpop.f32.mrb[0].mxu0
        %v573 = vpop.f32.mrb[0].mxu0
        %v574 = vadd.f32 0.0, %v573
        %v575 = vpop.f32.mrb[0].mxu0
        %576 = vmatprep.mubr.bf16.mxu0 0
        %577 = vmatmul.mubr.bf16.gmra.mrb[0].mxu0 %v416
        %v578 = vpop.f32.mrb[0].mxu0
        %v579 = vadd.f32 0.0, %v578
        %v580 = vpop.f32.mrb[0].mxu0
        %v581 = vpop.f32.mrb[0].mxu0
        %v582 = vadd.f32 0.0, %v581
        %v583 = vpop.f32.mrb[0].mxu0
        %584 = vdwg.mxu0
        %v585 = vmax.f32 %v459, %v475
        %v586 = vmax.f32 %v462, %v478
        %v587 = vmax.f32 %v467, %v483
        %v588 = vmax.f32 %v470, %v486
        %v589 = vmax.f32 %v585, %v491
        %v590 = vmax.f32 %v586, %v494
        %v591 = vmax.f32 %v587, %v499
        %v592 = vmax.f32 %v588, %v502
        %v593 = vmax.f32 %v589, %v507
        %v594 = vmax.f32 %v590, %v510
        %v595 = vmax.f32 %v591, %v515
        %v596 = vmax.f32 %v592, %v518
        %v597 = vmax.f32 %v593, %v523
        %v598 = vmax.f32 %v594, %v526
        %v599 = vmax.f32 %v595, %v531
        %v600 = vmax.f32 %v596, %v534
        %v601 = vmax.f32 %v597, %v539
        %v602 = vmax.f32 %v598, %v542
        %v603 = vmax.f32 %v599, %v547
        %v604 = vmax.f32 %v600, %v550
        %v605 = vmax.f32 %v601, %v555
        %v606 = vmax.f32 %v602, %v558
        %v607 = vmax.f32 %v603, %v563
        %v608 = vmax.f32 %v604, %v566
        %v609 = vmax.f32 %v605, %v571
        %v610 = vmax.f32 %v606, %v574
        %v611 = vmax.f32 %v607, %v579
        %v612 = vmax.f32 %v608, %v582
        %v613 = vmax.f32 %v609, %v610
        %v614 = vmax.f32 %v611, %v612
        %v615 = vmax.f32 %v613, %v614
        %v616 = vld [vmem:[#allocation2] sm:$0xff]
        %v617 = vmax.f32 %v616, %v615
        %618 = vst [vmem:[#allocation2] sm:$0xff] %v617
        // Predicated region
        $region41: #{arcface_forward.1} parent=35 // pred_check
          %p619 = pneg %p224
        $region42: #{arcface_forward.1} parent=35 // pred_check_branch
          %621 = sbr.rel (%p619) target = $region44
        $region43: #{arcface_forward.1} parent=35 // pred_region
          %v622 = vld [vmem:[#allocation2] sm:$0xff]
          %v623 = vrot.slane %v622, 4
          %v624 = vmax.f32 %v622, %v623
          %v625 = vrot.slane %v624, 2
          %v626 = vmax.f32 %v624, %v625
          %v627 = vrot.slane %v626, 1
          %v628 = vmax.f32 %v626, %v627
          %v629 = vpack.c.bf16 %v628, %v628
          %v630 = vld [vmem:[%s2] sm:$0xf]
          %v631 = vld [vmem:[%s2 + $0x4] sm:$0xf]
          %v632 = vld [vmem:[%s2 + $0x8] sm:$0xf]
          %v633 = vld [vmem:[%s2 + $0xc] sm:$0xf]
          %v634 = vld [vmem:[%s2 + $0x10] sm:$0xf]
          %v635 = vld [vmem:[%s2 + $0x14] sm:$0xf]
          %v636 = vld [vmem:[%s2 + $0x18] sm:$0xf]
          %v637 = vld [vmem:[%s2 + $0x1c] sm:$0xf]
          %v638 = vld [vmem:[%s2 + $0x20] sm:$0xf]
          %v639 = vld [vmem:[%s2 + $0x24] sm:$0xf]
          %v640 = vld [vmem:[%s2 + $0x28] sm:$0xf]
          %v641 = vld [vmem:[%s2 + $0x2c] sm:$0xf]
          %v642 = vld [vmem:[%s2 + $0x30] sm:$0xf]
          %v643 = vld [vmem:[%s2 + $0x34] sm:$0xf]
          %v644 = vld [vmem:[%s2 + $0x38] sm:$0xf]
          %v645 = vld [vmem:[%s2 + $0x3c] sm:$0xf]
          %v646 = vld [vmem:[%s3] sm:$0x1]
          %v663 = vunpack.c.l.b16 %v630
          %v664 = vunpack.c.l.b16 %v631
          %v665 = vunpack.c.l.b16 %v632
          %v666 = vunpack.c.l.b16 %v633
          %v667 = vunpack.c.l.b16 %v634
          %v668 = vunpack.c.l.b16 %v635
          %v669 = vunpack.c.l.b16 %v636
          %v670 = vunpack.c.l.b16 %v637
          %v671 = vunpack.c.l.b16 %v638
          %v672 = vunpack.c.l.b16 %v639
          %v673 = vunpack.c.l.b16 %v640
          %v674 = vunpack.c.l.b16 %v641
          %v675 = vunpack.c.l.b16 %v642
          %v676 = vunpack.c.l.b16 %v643
          %v677 = vunpack.c.l.b16 %v644
          %v678 = vunpack.c.l.b16 %v645
          %v679 = vpack.c.b16 %v664, %v663
          %v680 = vpack.c.b16 %v666, %v665
          %v681 = vpack.c.b16 %v668, %v667
          %v682 = vpack.c.b16 %v670, %v669
          %v683 = vpack.c.b16 %v672, %v671
          %v684 = vpack.c.b16 %v674, %v673
          %v685 = vpack.c.b16 %v676, %v675
          %v686 = vpack.c.b16 %v678, %v677
          %695 = vmatprep.subr.bf16.mxu0 0
          %696 = vmatpush1.bf16.msra.mxu0 %v679
          %697 = vmatprep.subr.bf16.mxu0 0
          %698 = vmatpush1.bf16.msra.mxu0 %v680
          %699 = vmatprep.subr.bf16.mxu0 0
          %700 = vmatpush1.bf16.msra.mxu0 %v681
          %701 = vmatprep.subr.bf16.mxu0 0
          %702 = vmatpush1.bf16.msra.mxu0 %v682
          %703 = vmatprep.subr.bf16.mxu0 0
          %704 = vmatpush1.bf16.msra.mxu0 %v683
          %705 = vmatprep.subr.bf16.mxu0 0
          %706 = vmatpush1.bf16.msra.mxu0 %v684
          %707 = vmatprep.subr.bf16.mxu0 0
          %708 = vmatpush1.bf16.msra.mxu0 %v685
          %709 = vmatprep.subr.bf16.mxu0 0
          %710 = vmatpush1.bf16.msra.mxu0 %v686
          %711 = vmatprep.subr.bf16.mxu0 0
          %712 = vmatpush1.bf16.msra.mxu0 0
          %713 = vmatprep.subr.bf16.mxu0 0
          %714 = vmatpush1.bf16.msra.mxu0 0
          %715 = vmatprep.subr.bf16.mxu0 0
          %716 = vmatpush1.bf16.msra.mxu0 0
          %717 = vmatprep.subr.bf16.mxu0 0
          %718 = vmatpush1.bf16.msra.mxu0 0
          %719 = vmatprep.subr.bf16.mxu0 0
          %720 = vmatpush1.bf16.msra.mxu0 0
          %721 = vmatprep.subr.bf16.mxu0 0
          %722 = vmatpush1.bf16.msra.mxu0 0
          %723 = vmatprep.subr.bf16.mxu0 0
          %724 = vmatpush1.bf16.msra.mxu0 0
          %725 = vmatprep.subr.bf16.mxu0 0
          %726 = vmatpush1.bf16.msra.mxu0 0
          %727 = vmatprep.mubr.bf16.mxu0 0
          %728 = vmatmul.mubr.bf16.gmra.mrb[0].mxu0 %v629
          %v729 = vpop.f32.mrb[0].mxu0
          %v730 = vadd.f32 %v646, %v729
          %v731 = vpop.f32.mrb[0].mxu0
          %v732 = vpop.f32.mrb[0].mxu0
          %v733 = vpop.f32.mrb[0].mxu0
          %734 = vdwg.mxu0
          %735 = vst [vmem:[%s212] sm:$0x1] %v730
        $region44: #{arcface_forward.1} parent=35 // pred_fallthru
          _
        %s736 = sand.u32 %s129, 1
        %s737 = scalar_lea.sflag [#allocation4], %s736
        %s738 = sand.u32 %s129, 1
        %s739 = scalar_lea.vmem [#allocation3], %s738
        // Predicated region
        $region45: #{arcface_forward.1} parent=35 // pred_check
          %p740 = pneg %p139
        $region46: #{arcface_forward.1} parent=35 // pred_check_branch
          %742 = sbr.rel (%p740) target = $region48
        $region47: #{arcface_forward.1} parent=35 // pred_region
          %s744 = ssub.s32 16, 16
          %745 = vsyncadd %s737, %s744
          %s746 = smul.addr %s22, 16
          %s747 = scalar_lea.hbm %s4, %s746
          %s749 = sshll.u32 %s739, 4
          %s750 = int_to_ptr.vmem [resolvable:$true] %s749
          %752 = dma.vmem_to_hbm [thread:$0]  %s750, 16, %s747, %s737
        $region48: #{arcface_forward.1} parent=35 // pred_fallthru
          _
      $region36: #{arcface_forward.1} parent=5 // pred_fallthru
        _
      %p753 = scmp.le.s32.totalorder 2, %s13
      // Predicated region
      $region49: #{arcface_forward.1} parent=5 // pred_check
        %p754 = pneg %p753
      $region50: #{arcface_forward.1} parent=5 // pred_check_branch
        %756 = sbr.rel (%p754) target = $region52
      $region51: #{arcface_forward.1} parent=5 // pred_region
        %s757 = ssub.s32 %s13, 2
        // Predicated region
        $region53: #{arcface_forward.1} parent=51 // pred_check
          %p758 = pneg %p145
        $region54: #{arcface_forward.1} parent=51 // pred_check_branch
          %760 = sbr.rel (%p758) target = $region56
        $region55: #{arcface_forward.1} parent=51 // pred_region
          %s761 = sand.u32 %s130, 1
          %s762 = scalar_lea.sflag [#allocation4], %s761
          %s763 = sand.u32 %s130, 1
          %s764 = scalar_lea.vmem [#allocation3], %s763
          %765 = dma.done %s762, 16
        $region56: #{arcface_forward.1} parent=51 // pred_fallthru
          _
      $region52: #{arcface_forward.1} parent=5 // pred_fallthru
        _
    $region6: #{arcface_forward.1} parent=1 // loop_footer
      %s17 = sadd.s32 1, %s13
    $region7: #{arcface_forward.1} parent=1 // loop_footer_branch
      %12 = sbr.rel target = $region3
    $region8: #{arcface_forward.1} parent=1 // loop_exit
      _
    %766 = vsyncpa [#allocation4], 1
    %s767 = scalar_lea.sflag [#allocation4], 1
    %768 = vsyncpa %s767, 1

</llo_original>
